<compile_context>
chip_gen: v5e
topology: v5e:2x2
jax: 0.10.0
libtpu: 0.0.40
codegen_flags: <defaults>
</compile_context>

<pallas_src>
import functools

import jax
import jax.numpy as jnp
from jax.experimental import pallas as pl
from jax.experimental.pallas import tpu as pltpu


def _round_up(x, m):
    return ((x + m - 1) // m) * m


# ----------------------------------------------------------------------------
# Pallas kernel: fused MLP head of NCF
#   x  = concat(u, i [, t])                (staged into VMEM scratch)
#   h1 = relu(x @ W1 + b1)
#   h2 = relu(h1 @ W2 + b2)
#   h3 = relu(h2 @ W3 + b3)
#   out = sigmoid(sum(h3 * w4_row, -1) + b4)
# ----------------------------------------------------------------------------
def _ncf_mlp_kernel(has_text, emb_dim, text_dim, *refs):
    if has_text:
        (u_ref, i_ref, t_ref, w1_ref, b1_ref, w2_ref, b2_ref,
         w3_ref, b3_ref, w4_ref, b4_ref, out_ref, x_ref) = refs
    else:
        (u_ref, i_ref, w1_ref, b1_ref, w2_ref, b2_ref,
         w3_ref, b3_ref, w4_ref, b4_ref, out_ref, x_ref) = refs
        t_ref = None

    # Fused "concat": stage the slabs into one (tb, in_dim) VMEM tile so layer
    # 1 runs as a single full-systolic-depth matmul instead of three
    # under-filled K=64/64/384 slabs.
    x_ref[:, 0:emb_dim] = u_ref[...]
    x_ref[:, emb_dim:2 * emb_dim] = i_ref[...]
    if has_text:
        x_ref[:, 2 * emb_dim:2 * emb_dim + text_dim] = t_ref[...]

    # Layer 1 (f32 accumulation on the MXU).
    h = jnp.dot(x_ref[...], w1_ref[...], preferred_element_type=jnp.float32)
    h = jnp.maximum(h + b1_ref[...], 0.0)

    # Layer 2
    h = jnp.dot(h.astype(w2_ref.dtype), w2_ref[...],
                preferred_element_type=jnp.float32) + b2_ref[...]
    h = jnp.maximum(h, 0.0)

    # Layer 3
    h = jnp.dot(h.astype(w3_ref.dtype), w3_ref[...],
                preferred_element_type=jnp.float32) + b3_ref[...]
    h = jnp.maximum(h, 0.0)

    # Layer 4 (32 -> 1): VPU multiply + XLU cross-lane reduce instead of an
    # N=1 MXU matmul (which would use 1/256 of the MXU width).
    h = jnp.sum(h * w4_ref[...], axis=-1, keepdims=True) + b4_ref[...]

    # Sigmoid (exp on the EUP); exact form keeps f32 parity with the ref.
    out_ref[...] = (1.0 / (1.0 + jnp.exp(-h))).astype(out_ref.dtype)


# ----------------------------------------------------------------------------
# Wrapper: batch-tiled pallas_call
# ----------------------------------------------------------------------------
def ncf_mlp_pallas(user_emb, item_emb, text_emb,
                   w1, b1, w2, b2, w3, b3, w4, b4, *, block_b=4096):
    has_text = text_emb is not None
    B, emb_dim = user_emb.shape
    text_dim = text_emb.shape[1] if has_text else 0
    in_dim = 2 * emb_dim + text_dim
    h1, h2, h3 = w1.shape[1], w2.shape[1], w3.shape[1]

    cd = w1.dtype                       # compute/storage dtype (bf16 or f32)
    itemsize = int(jnp.dtype(cd).itemsize)

    # Batch tile: multiple of 8 sublanes, capped so that
    #  (a) the grid has >=2 steps whenever B >= 16 (both TCs on v7x), and
    #  (b) the working set (double-buffered inputs + padded (tb,1) out blocks
    #      + concat scratch) stays under ~24 MiB -> safely below the 32 MiB
    #      default scoped-VMEM limit on v5e/v6e/v7x.
    per_row_bytes = (2 * in_dim * itemsize      # input slabs, double-buffered
                     + in_dim * itemsize        # concat scratch (single)
                     + 2 * 128 * 4)             # (tb,1) out block pads to 128 lanes
    vmem_budget = 24 * 1024 * 1024
    tb_vmem = max(8, (vmem_budget // per_row_bytes) // 8 * 8)
    tb_split = _round_up(max(1, -(-B // 2)), 8)
    tb = max(8, min(block_b, tb_vmem, tb_split))
    grid = (pl.cdiv(B, tb),)            # partial last tile; no jnp.pad copy

    def row_spec(cols):
        return pl.BlockSpec((tb, cols), lambda i: (i, 0))

    def full_spec(r, c):
        return pl.BlockSpec((r, c), lambda i: (0, 0))

    operands = [user_emb, item_emb]
    in_specs = [row_spec(emb_dim), row_spec(emb_dim)]
    if has_text:
        operands.append(text_emb)
        in_specs.append(row_spec(text_dim))
    operands += [w1, b1, w2, b2, w3, b3, w4, b4]
    in_specs += [full_spec(in_dim, h1), full_spec(1, h1),
                 full_spec(h1, h2), full_spec(1, h2),
                 full_spec(h2, h3), full_spec(1, h3),
                 full_spec(1, h3), full_spec(1, 1)]

    # Advisory cost estimate so XLA schedules the surrounding gathers sensibly.
    flops = 2 * B * (in_dim * h1 + h1 * h2 + h2 * h3 + h3)
    bytes_accessed = (B * in_dim * itemsize + B * 4
                      + (in_dim * h1 + h1 * h2 + h2 * h3) * itemsize
                      + (h1 + h2 + h3 + h3 + 1) * 4)
    cost = pl.CostEstimate(flops=flops, transcendentals=B,
                           bytes_accessed=bytes_accessed)

    out = pl.pallas_call(
        functools.partial(_ncf_mlp_kernel, has_text, emb_dim, text_dim),
        out_shape=jax.ShapeDtypeStruct((B, 1), jnp.float32),
        grid=grid,
        in_specs=in_specs,
        out_specs=pl.BlockSpec((tb, 1), lambda i: (i, 0)),
        scratch_shapes=[pltpu.VMEM((tb, in_dim), cd)],
        compiler_params=pltpu.CompilerParams(
            dimension_semantics=("parallel",)),
        cost_estimate=cost,
    )(*operands)
    return out


# ----------------------------------------------------------------------------
# Parameter init (mirrors nn.Embedding ~ N(0,1) and nn.Linear default
# U(-1/sqrt(fan_in), 1/sqrt(fan_in))) -- kept in f32 for the reference.
# ----------------------------------------------------------------------------
def init_params(key, num_users, num_items, embedding_dim=64, text_emb_dim=384):
    ks = jax.random.split(key, 12)
    in_dim = embedding_dim * 2 + text_emb_dim

    def linear(kw, kb, fan_in, fan_out):
        bound = 1.0 / jnp.sqrt(fan_in)
        w = jax.random.uniform(kw, (fan_in, fan_out), jnp.float32, -bound, bound)
        b = jax.random.uniform(kb, (1, fan_out), jnp.float32, -bound, bound)
        return w, b

    params = {}
    params["user_emb"] = jax.random.normal(ks[0], (num_users, embedding_dim),
                                           jnp.float32)
    params["item_emb"] = jax.random.normal(ks[1], (num_items, embedding_dim),
                                           jnp.float32)
    params["w1"], params["b1"] = linear(ks[2], ks[3], in_dim, 128)
    params["w2"], params["b2"] = linear(ks[4], ks[5], 128, 64)
    params["w3"], params["b3"] = linear(ks[6], ks[7], 64, 32)
    params["w4"], params["b4"] = linear(ks[8], ks[9], 32, 1)
    return params


def prepare_params(params, compute_dtype=jnp.bfloat16):
    """Cast embedding tables + matmul weights to the compute dtype ONCE, at the
    source, so gathers emit compute-dtype activations (no wrapper astype pass
    over the (B, in_dim) stream).  Biases / final reduce row stay f32."""
    p = dict(params)
    for k in ("user_emb", "item_emb", "w1", "w2", "w3"):
        p[k] = params[k].astype(compute_dtype)
    for k in ("b1", "b2", "b3", "w4", "b4"):
        p[k] = params[k].astype(jnp.float32)
    return p


# ----------------------------------------------------------------------------
# Full NCF forward: embedding gathers (JAX glue) + fused, batch-tiled MLP
# ----------------------------------------------------------------------------
def ncf_forward(params, user_ids, item_ids, text_embeddings=None,
                *, block_b=4096):
    cd = params["w1"].dtype
    user_emb = params["user_emb"][user_ids]             # (B, 64), table dtype
    item_emb = params["item_emb"][item_ids]             # (B, 64)
    if user_emb.dtype != cd:
        user_emb = user_emb.astype(cd)
    if item_emb.dtype != cd:
        item_emb = item_emb.astype(cd)

    text_emb = None
    if text_embeddings is not None:
        text_emb = text_embeddings[item_ids]             # (B, 384)
        if text_emb.dtype != cd:
            text_emb = text_emb.astype(cd)

    # w4 kept as a (1, 32) f32 row for the in-kernel elementwise reduction.
    w4_row = params["w4"].reshape(1, -1).astype(jnp.float32)

    out = ncf_mlp_pallas(
        user_emb, item_emb, text_emb,
        params["w1"], params["b1"].astype(jnp.float32),
        params["w2"], params["b2"].astype(jnp.float32),
        params["w3"], params["b3"].astype(jnp.float32),
        w4_row, params["b4"].astype(jnp.float32),
        block_b=block_b)
    return out.squeeze()                                 # matches .squeeze()


# Pure-JAX reference for correctness check.
def ncf_forward_ref(params, user_ids, item_ids, text_embeddings=None):
    user_emb = params["user_emb"][user_ids]
    item_emb = params["item_emb"][item_ids]
    if text_embeddings is not None:
        x = jnp.concatenate([user_emb, item_emb, text_embeddings[item_ids]],
                            axis=1)
    else:
        x = jnp.concatenate([user_emb, item_emb], axis=1)
    h = jnp.maximum(x @ params["w1"] + params["b1"], 0.0)
    h = jnp.maximum(h @ params["w2"] + params["b2"], 0.0)
    h = jnp.maximum(h @ params["w3"] + params["b3"], 0.0)
    h = h @ params["w4"] + params["b4"]
    return jax.nn.sigmoid(h).squeeze()


if __name__ == "__main__":
    num_users, num_items = 50, 40
    embedding_dim, text_emb_dim = 64, 384
    batch = 8

    key = jax.random.PRNGKey(0)
    k_par, k_u, k_i, k_t = jax.random.split(key, 4)

    params = init_params(k_par, num_users, num_items, embedding_dim,
                         text_emb_dim)
    user_ids = jax.random.randint(k_u, (batch,), 0, num_users)
    item_ids = jax.random.randint(k_i, (batch,), 0, num_items)
    text_embeddings = jax.random.normal(k_t, (num_items, text_emb_dim),
                                        jnp.float32)

    ref = ncf_forward_ref(params, user_ids, item_ids, text_embeddings)

    # f32 storage path: near bit-exact match to the reference.
    out_f32 = jax.block_until_ready(
        ncf_forward(prepare_params(params, jnp.float32),
                    user_ids, item_ids, text_embeddings))
    assert out_f32.shape == (batch,)
    assert jnp.allclose(out_f32, ref, atol=1e-5, rtol=1e-5), (out_f32, ref)

    # Default bf16 storage path (bf16 tables/weights at the source, f32
    # accumulation): looser tolerance.
    params_bf16 = prepare_params(params)                  # bf16 by default
    text_bf16 = text_embeddings.astype(jnp.bfloat16)
    out_bf16 = jax.block_until_ready(
        ncf_forward(params_bf16, user_ids, item_ids, text_bf16))
    assert out_bf16.shape == (batch,)
    assert jnp.allclose(out_bf16, ref, atol=5e-2, rtol=5e-2), (out_bf16, ref)

    # No-text variant (text_emb_dim = 0): separate tiny model, smoke check.
    params_nt = init_params(jax.random.PRNGKey(1), num_users, num_items,
                            embedding_dim, 0)
    ref_nt = ncf_forward_ref(params_nt, user_ids, item_ids, None)
    out_nt = jax.block_until_ready(
        ncf_forward(prepare_params(params_nt, jnp.float32),
                    user_ids, item_ids, None))
    assert jnp.allclose(out_nt, ref_nt, atol=1e-5, rtol=1e-5), (out_nt, ref_nt)

    print("KERNEL_OK")
</pallas_src>

<mosaic_0001>
module attributes {stable_mosaic.version = 11 : i64} {
  func.func @_ncf_mlp_kernel(%arg0: i32, %arg1: memref<8x64xf32, #tpu.memory_space<vmem>>, %arg2: memref<8x64xf32, #tpu.memory_space<vmem>>, %arg3: memref<8x384xf32, #tpu.memory_space<vmem>>, %arg4: memref<512x128xf32, #tpu.memory_space<vmem>>, %arg5: memref<1x128xf32, #tpu.memory_space<vmem>>, %arg6: memref<128x64xf32, #tpu.memory_space<vmem>>, %arg7: memref<1x64xf32, #tpu.memory_space<vmem>>, %arg8: memref<64x32xf32, #tpu.memory_space<vmem>>, %arg9: memref<1x32xf32, #tpu.memory_space<vmem>>, %arg10: memref<1x32xf32, #tpu.memory_space<vmem>>, %arg11: memref<1x1xf32, #tpu.memory_space<vmem>>, %arg12: memref<8x1xf32, #tpu.memory_space<vmem>>, %arg13: memref<8x512xf32, #tpu.memory_space<vmem>>) attributes {dimension_semantics = [#tpu.dimension_semantics<parallel>], iteration_bounds = array<i64: 1>, scalar_prefetch = 0 : i64, scratch_operands = 1 : i64, tpu.core_type = #tpu.core_type<tc>, window_params = [{transform_indices = @transform_0, window_bounds = array<i64: 8, 64>}, {transform_indices = @transform_1, window_bounds = array<i64: 8, 64>}, {transform_indices = @transform_2, window_bounds = array<i64: 8, 384>}, {pipeline_mode = #tpu.pipeline_mode<synchronous>, transform_indices = @transform_3, window_bounds = array<i64: 512, 128>}, {pipeline_mode = #tpu.pipeline_mode<synchronous>, transform_indices = @transform_4, window_bounds = array<i64: 1, 128>}, {pipeline_mode = #tpu.pipeline_mode<synchronous>, transform_indices = @transform_5, window_bounds = array<i64: 128, 64>}, {pipeline_mode = #tpu.pipeline_mode<synchronous>, transform_indices = @transform_6, window_bounds = array<i64: 1, 64>}, {pipeline_mode = #tpu.pipeline_mode<synchronous>, transform_indices = @transform_7, window_bounds = array<i64: 64, 32>}, {pipeline_mode = #tpu.pipeline_mode<synchronous>, transform_indices = @transform_8, window_bounds = array<i64: 1, 32>}, {pipeline_mode = #tpu.pipeline_mode<synchronous>, transform_indices = @transform_9, window_bounds = array<i64: 1, 32>}, {pipeline_mode = #tpu.pipeline_mode<synchronous>, transform_indices = @transform_10, window_bounds = array<i64: 1, 1>}, {transform_indices = @transform_11, window_bounds = array<i64: 8, 1>}]} {
    %c0 = arith.constant 0 : index
    %c0_0 = arith.constant 0 : index
    %0 = vector.load %arg1[%c0, %c0_0] : memref<8x64xf32, #tpu.memory_space<vmem>>, vector<8x64xf32>
    %c0_1 = arith.constant 0 : index
    %c0_2 = arith.constant 0 : index
    %1 = vector.load %arg13[%c0_1, %c0_2] : memref<8x512xf32, #tpu.memory_space<vmem>>, vector<8x64xf32>
    tpu.vector_store %arg13[%c0_1, %c0_2], %0 {strides = array<i32>} : memref<8x512xf32, #tpu.memory_space<vmem>>, vector<8x64xf32>,
    %c0_3 = arith.constant 0 : index
    %c0_4 = arith.constant 0 : index
    %2 = vector.load %arg2[%c0_3, %c0_4] : memref<8x64xf32, #tpu.memory_space<vmem>>, vector<8x64xf32>
    %c0_5 = arith.constant 0 : index
    %c64 = arith.constant 64 : index
    %3 = vector.load %arg13[%c0_5, %c64] : memref<8x512xf32, #tpu.memory_space<vmem>>, vector<8x64xf32>
    tpu.vector_store %arg13[%c0_5, %c64], %2 {strides = array<i32>} : memref<8x512xf32, #tpu.memory_space<vmem>>, vector<8x64xf32>,
    %c0_6 = arith.constant 0 : index
    %c0_7 = arith.constant 0 : index
    %4 = vector.load %arg3[%c0_6, %c0_7] : memref<8x384xf32, #tpu.memory_space<vmem>>, vector<8x384xf32>
    %c0_8 = arith.constant 0 : index
    %c128 = arith.constant 128 : index
    %5 = vector.load %arg13[%c0_8, %c128] : memref<8x512xf32, #tpu.memory_space<vmem>>, vector<8x384xf32>
    tpu.vector_store %arg13[%c0_8, %c128], %4 {strides = array<i32>} : memref<8x512xf32, #tpu.memory_space<vmem>>, vector<8x384xf32>,
    %c0_9 = arith.constant 0 : index
    %c0_10 = arith.constant 0 : index
    %6 = vector.load %arg13[%c0_9, %c0_10] : memref<8x512xf32, #tpu.memory_space<vmem>>, vector<8x512xf32>
    %c0_11 = arith.constant 0 : index
    %c0_12 = arith.constant 0 : index
    %7 = vector.load %arg4[%c0_11, %c0_12] : memref<512x128xf32, #tpu.memory_space<vmem>>, vector<512x128xf32>
    %cst = arith.constant dense<0.000000e+00> : vector<8x128xf32>
    %8 = tpu.matmul %6, %7, %cst {dimension_numbers = #tpu.dot_dimension_numbers<[1], [0], [0], [1], [0, 0, 1, 1], [], []>} : vector<8x512xf32>, vector<512x128xf32>, vector<8x128xf32> -> vector<8x128xf32>
    %c0_13 = arith.constant 0 : index
    %c0_14 = arith.constant 0 : index
    %9 = vector.load %arg5[%c0_13, %c0_14] : memref<1x128xf32, #tpu.memory_space<vmem>>, vector<1x128xf32>
    %10 = vector.broadcast %9 : vector<1x128xf32> to vector<8x128xf32>
    %11 = arith.addf %8, %10 : vector<8x128xf32>
    %cst_15 = arith.constant 0.000000e+00 : f32
    %12 = vector.broadcast %cst_15 : f32 to vector<8x128xf32>
    %13 = arith.maximumf %11, %12 : vector<8x128xf32>
    %c0_16 = arith.constant 0 : index
    %c0_17 = arith.constant 0 : index
    %14 = vector.load %arg6[%c0_16, %c0_17] : memref<128x64xf32, #tpu.memory_space<vmem>>, vector<128x64xf32>
    %cst_18 = arith.constant dense<0.000000e+00> : vector<8x64xf32>
    %15 = tpu.matmul %13, %14, %cst_18 {dimension_numbers = #tpu.dot_dimension_numbers<[1], [0], [0], [1], [0, 0, 1, 1], [], []>} : vector<8x128xf32>, vector<128x64xf32>, vector<8x64xf32> -> vector<8x64xf32>
    %c0_19 = arith.constant 0 : index
    %c0_20 = arith.constant 0 : index
    %16 = vector.load %arg7[%c0_19, %c0_20] : memref<1x64xf32, #tpu.memory_space<vmem>>, vector<1x64xf32>
    %17 = vector.broadcast %16 : vector<1x64xf32> to vector<8x64xf32>
    %18 = arith.addf %15, %17 : vector<8x64xf32>
    %cst_21 = arith.constant 0.000000e+00 : f32
    %19 = vector.broadcast %cst_21 : f32 to vector<8x64xf32>
    %20 = arith.maximumf %18, %19 : vector<8x64xf32>
    %c0_22 = arith.constant 0 : index
    %c0_23 = arith.constant 0 : index
    %21 = vector.load %arg8[%c0_22, %c0_23] : memref<64x32xf32, #tpu.memory_space<vmem>>, vector<64x32xf32>
    %cst_24 = arith.constant dense<0.000000e+00> : vector<8x32xf32>
    %22 = tpu.matmul %20, %21, %cst_24 {dimension_numbers = #tpu.dot_dimension_numbers<[1], [0], [0], [1], [0, 0, 1, 1], [], []>} : vector<8x64xf32>, vector<64x32xf32>, vector<8x32xf32> -> vector<8x32xf32>
    %c0_25 = arith.constant 0 : index
    %c0_26 = arith.constant 0 : index
    %23 = vector.load %arg9[%c0_25, %c0_26] : memref<1x32xf32, #tpu.memory_space<vmem>>, vector<1x32xf32>
    %24 = vector.broadcast %23 : vector<1x32xf32> to vector<8x32xf32>
    %25 = arith.addf %22, %24 : vector<8x32xf32>
    %cst_27 = arith.constant 0.000000e+00 : f32
    %26 = vector.broadcast %cst_27 : f32 to vector<8x32xf32>
    %27 = arith.maximumf %25, %26 : vector<8x32xf32>
    %c0_28 = arith.constant 0 : index
    %c0_29 = arith.constant 0 : index
    %28 = vector.load %arg10[%c0_28, %c0_29] : memref<1x32xf32, #tpu.memory_space<vmem>>, vector<1x32xf32>
    %29 = vector.broadcast %28 : vector<1x32xf32> to vector<8x32xf32>
    %30 = arith.mulf %27, %29 : vector<8x32xf32>
    %cst_30 = arith.constant dense<0.000000e+00> : vector<8xf32>
    %31 = vector.multi_reduction <add>, %30, %cst_30 [1] : vector<8x32xf32> to vector<8xf32>
    %32 = vector.shape_cast %31 : vector<8xf32> to vector<8x1xf32>
    %c0_31 = arith.constant 0 : index
    %c0_32 = arith.constant 0 : index
    %33 = vector.load %arg11[%c0_31, %c0_32] : memref<1x1xf32, #tpu.memory_space<vmem>>, vector<1x1xf32>
    %34 = vector.broadcast %33 : vector<1x1xf32> to vector<8x1xf32>
    %35 = arith.addf %32, %34 : vector<8x1xf32>
    %cst_33 = arith.constant 0.000000e+00 : f32
    %36 = vector.broadcast %cst_33 : f32 to vector<8x1xf32>
    %37 = arith.subf %36, %35 : vector<8x1xf32>
    %38 = math.exp %37 : vector<8x1xf32>
    %cst_34 = arith.constant 1.000000e+00 : f32
    %39 = vector.broadcast %cst_34 : f32 to vector<8x1xf32>
    %40 = arith.addf %39, %38 : vector<8x1xf32>
    %cst_35 = arith.constant 1.000000e+00 : f32
    %41 = vector.broadcast %cst_35 : f32 to vector<8x1xf32>
    %42 = arith.divf %41, %40 : vector<8x1xf32>
    %c0_36 = arith.constant 0 : index
    %c0_37 = arith.constant 0 : index
    %43 = vector.load %arg12[%c0_36, %c0_37] : memref<8x1xf32, #tpu.memory_space<vmem>>, vector<8x1xf32>
    tpu.vector_store %arg12[%c0_36, %c0_37], %42 {strides = array<i32>} : memref<8x1xf32, #tpu.memory_space<vmem>>, vector<8x1xf32>,
    return
  }
  func.func @transform_0(%arg0: i32) -> (i32, i32) {
    %c0_i32 = arith.constant 0 : i32
    %c0_i32_0 = arith.constant 0 : i32
    return %arg0, %c0_i32 : i32, i32
  }
  func.func @transform_1(%arg0: i32) -> (i32, i32) {
    %c0_i32 = arith.constant 0 : i32
    %c0_i32_0 = arith.constant 0 : i32
    return %arg0, %c0_i32 : i32, i32
  }
  func.func @transform_2(%arg0: i32) -> (i32, i32) {
    %c0_i32 = arith.constant 0 : i32
    %c0_i32_0 = arith.constant 0 : i32
    return %arg0, %c0_i32 : i32, i32
  }
  func.func @transform_3(%arg0: i32) -> (i32, i32) {
    %c0_i32 = arith.constant 0 : i32
    %c0_i32_0 = arith.constant 0 : i32
    %c0_i32_1 = arith.constant 0 : i32
    return %c0_i32, %c0_i32_0 : i32, i32
  }
  func.func @transform_4(%arg0: i32) -> (i32, i32) {
    %c0_i32 = arith.constant 0 : i32
    %c0_i32_0 = arith.constant 0 : i32
    %c0_i32_1 = arith.constant 0 : i32
    return %c0_i32, %c0_i32_0 : i32, i32
  }
  func.func @transform_5(%arg0: i32) -> (i32, i32) {
    %c0_i32 = arith.constant 0 : i32
    %c0_i32_0 = arith.constant 0 : i32
    %c0_i32_1 = arith.constant 0 : i32
    return %c0_i32, %c0_i32_0 : i32, i32
  }
  func.func @transform_6(%arg0: i32) -> (i32, i32) {
    %c0_i32 = arith.constant 0 : i32
    %c0_i32_0 = arith.constant 0 : i32
    %c0_i32_1 = arith.constant 0 : i32
    return %c0_i32, %c0_i32_0 : i32, i32
  }
  func.func @transform_7(%arg0: i32) -> (i32, i32) {
    %c0_i32 = arith.constant 0 : i32
    %c0_i32_0 = arith.constant 0 : i32
    %c0_i32_1 = arith.constant 0 : i32
    return %c0_i32, %c0_i32_0 : i32, i32
  }
  func.func @transform_8(%arg0: i32) -> (i32, i32) {
    %c0_i32 = arith.constant 0 : i32
    %c0_i32_0 = arith.constant 0 : i32
    %c0_i32_1 = arith.constant 0 : i32
    return %c0_i32, %c0_i32_0 : i32, i32
  }
  func.func @transform_9(%arg0: i32) -> (i32, i32) {
    %c0_i32 = arith.constant 0 : i32
    %c0_i32_0 = arith.constant 0 : i32
    %c0_i32_1 = arith.constant 0 : i32
    return %c0_i32, %c0_i32_0 : i32, i32
  }
  func.func @transform_10(%arg0: i32) -> (i32, i32) {
    %c0_i32 = arith.constant 0 : i32
    %c0_i32_0 = arith.constant 0 : i32
    %c0_i32_1 = arith.constant 0 : i32
    return %c0_i32, %c0_i32_0 : i32, i32
  }
  func.func @transform_11(%arg0: i32) -> (i32, i32) {
    %c0_i32 = arith.constant 0 : i32
    %c0_i32_0 = arith.constant 0 : i32
    return %arg0, %c0_i32 : i32, i32
  }
}

</mosaic_0001>

<llo_original>
// kernel: tpu_custom_call.1
$region0: #{tpu_custom_call.1}
  #allocation0 [shape = 'u32[]', space=smem, size = 0x4, offset = 0x4, fixed_abs, tag = 'smem constant byte address 0x4 - core index']
  #allocation1 [shape = 'u32[72,128]{1,0:T(1,128)}', space=vmem, size = 0x9000, scoped, tag = 'internal scratch']
  #allocation2 [shape = 'f32[8,512]{1,0:T(8,128)}', space=vmem, size = 0x4000, scoped, tag = 'scratch operand']
  #allocation3 [shape = 'f32[1,1]{1,0:T(1,128)S(1)}', space=vmem, size = 0x200, scoped, tag = 'scoped memory for tpu_custom_call.1']
  %s0 = inlined_call_operand.vmem [shape: f32[8,64], index: 0, kind: input, shape index: {}]
  %s1 = inlined_call_operand.vmem [shape: f32[8,64], index: 1, kind: input, shape index: {}]
  %s2 = inlined_call_operand.vmem [shape: f32[8,384], index: 2, kind: input, shape index: {}]
  %s3 = inlined_call_operand.hbm [shape: f32[512,128], index: 3, kind: input, shape index: {}]
  %s4 = inlined_call_operand.vmem [shape: f32[1,128], index: 4, kind: input, shape index: {}]
  %s5 = inlined_call_operand.vmem [shape: f32[128,64], index: 5, kind: input, shape index: {}]
  %s6 = inlined_call_operand.vmem [shape: f32[1,64], index: 6, kind: input, shape index: {}]
  %s7 = inlined_call_operand.vmem [shape: f32[64,32], index: 7, kind: input, shape index: {}]
  %s8 = inlined_call_operand.vmem [shape: f32[1,32], index: 8, kind: input, shape index: {}]
  %s9 = inlined_call_operand.vmem [shape: f32[1,32], index: 9, kind: input, shape index: {}]
  %s10 = inlined_call_operand.<no memory space> [shape: f32[1,1], index: 10, kind: input, shape index: {}]
  %s11 = inlined_call_operand.vmem [shape: f32[8,1], index: 11, kind: output, shape index: {}]
  %s12 = sld [smem:[#allocation0]]
  $region58: #{tpu_custom_call.1} parent=0
    _
  %s14 = ssub.s32 1, %s12
  %s15 = scalar_select 0, %s14, %s12
  %v16 = vstv %s10
  %17 = vst [vmem:[#allocation3] sm:$0x1] %v16
  $region1: #{tpu_custom_call.1} parent=0
    #allocation4 [shape = 'u8[262144]{0}', space=vmem, size = 0x40000, scoped, tag = 'input window, operand 3, single buffered']
    #allocation5 [shape = 's32[1]{0}', space=sflag, size = 0x4, scoped, tag = 'scoped memory for tpu_custom_call.1']
    %18 = vsyncpa [#allocation5], 0
    // Predicated region
    $region2: #{tpu_custom_call.1} parent=1 // pred_check
      _
    $region3: #{tpu_custom_call.1} parent=1 // pred_check_branch
      %20 = sbr.rel (0) target = $region5
    $region4: #{tpu_custom_call.1} parent=1 // pred_region
      _
    $region5: #{tpu_custom_call.1} parent=1 // pred_fallthru
      _
    // Predicated region
    $region6: #{tpu_custom_call.1} parent=1 // pred_check
      _
    $region7: #{tpu_custom_call.1} parent=1 // pred_check_branch
      %22 = sbr.rel (0) target = $region9
    $region8: #{tpu_custom_call.1} parent=1 // pred_region
      _
    $region9: #{tpu_custom_call.1} parent=1 // pred_fallthru
      _
    // Predicated region
    $region10: #{tpu_custom_call.1} parent=1 // pred_check
      _
    $region11: #{tpu_custom_call.1} parent=1 // pred_check_branch
      %24 = sbr.rel (0) target = $region13
    $region12: #{tpu_custom_call.1} parent=1 // pred_region
      _
    $region13: #{tpu_custom_call.1} parent=1 // pred_fallthru
      _
    // Predicated region
    $region14: #{tpu_custom_call.1} parent=1 // pred_check
      _
    $region15: #{tpu_custom_call.1} parent=1 // pred_check_branch
      %26 = sbr.rel (0) target = $region17
    $region16: #{tpu_custom_call.1} parent=1 // pred_region
      %28 = vsyncadd [#allocation5], 0
      %s29 = sshll.u32 %s3, 4
      %s30 = int_to_ptr.hbm [resolvable:$true] %s29
      %s31 = sshll.u32 [#allocation4], 4
      %s32 = int_to_ptr.vmem [resolvable:$true] %s31
      %37 = dma.hbm_to_vmem [thread:$0]  %s30, 8192, %s32, [#allocation5], 128, 128, 8
    $region17: #{tpu_custom_call.1} parent=1 // pred_fallthru
      _
    // Predicated region
    $region18: #{tpu_custom_call.1} parent=1 // pred_check
      _
    $region19: #{tpu_custom_call.1} parent=1 // pred_check_branch
      %39 = sbr.rel (0) target = $region21
    $region20: #{tpu_custom_call.1} parent=1 // pred_region
      _
    $region21: #{tpu_custom_call.1} parent=1 // pred_fallthru
      _
    // Predicated region
    $region22: #{tpu_custom_call.1} parent=1 // pred_check
      _
    $region23: #{tpu_custom_call.1} parent=1 // pred_check_branch
      %41 = sbr.rel (0) target = $region25
    $region24: #{tpu_custom_call.1} parent=1 // pred_region
      _
    $region25: #{tpu_custom_call.1} parent=1 // pred_fallthru
      _
    // Predicated region
    $region26: #{tpu_custom_call.1} parent=1 // pred_check
      _
    $region27: #{tpu_custom_call.1} parent=1 // pred_check_branch
      %43 = sbr.rel (0) target = $region29
    $region28: #{tpu_custom_call.1} parent=1 // pred_region
      _
    $region29: #{tpu_custom_call.1} parent=1 // pred_fallthru
      _
    // Predicated region
    $region30: #{tpu_custom_call.1} parent=1 // pred_check
      _
    $region31: #{tpu_custom_call.1} parent=1 // pred_check_branch
      %45 = sbr.rel (0) target = $region33
    $region32: #{tpu_custom_call.1} parent=1 // pred_region
      _
    $region33: #{tpu_custom_call.1} parent=1 // pred_fallthru
      _
    // Predicated region
    $region34: #{tpu_custom_call.1} parent=1 // pred_check
      _
    $region35: #{tpu_custom_call.1} parent=1 // pred_check_branch
      %47 = sbr.rel (0) target = $region37
    $region36: #{tpu_custom_call.1} parent=1 // pred_region
      _
    $region37: #{tpu_custom_call.1} parent=1 // pred_fallthru
      _
    // Predicated region
    $region38: #{tpu_custom_call.1} parent=1 // pred_check
      _
    $region39: #{tpu_custom_call.1} parent=1 // pred_check_branch
      %49 = sbr.rel (0) target = $region41
    $region40: #{tpu_custom_call.1} parent=1 // pred_region
      _
    $region41: #{tpu_custom_call.1} parent=1 // pred_fallthru
      _
    // Predicated region
    $region42: #{tpu_custom_call.1} parent=1 // pred_check
      _
    $region43: #{tpu_custom_call.1} parent=1 // pred_check_branch
      %51 = sbr.rel (0) target = $region45
    $region44: #{tpu_custom_call.1} parent=1 // pred_region
      _
    $region45: #{tpu_custom_call.1} parent=1 // pred_fallthru
      _
    // Predicated region
    $region46: #{tpu_custom_call.1} parent=1 // pred_check
      _
    $region47: #{tpu_custom_call.1} parent=1 // pred_check_branch
      %53 = sbr.rel (0) target = $region49
    $region48: #{tpu_custom_call.1} parent=1 // pred_region
      %55 = dma.done [#allocation5], 8192
    $region49: #{tpu_custom_call.1} parent=1 // pred_fallthru
      _
    %v56 = vld [vmem:[%s0] sm:$0xff]
    %vm57 = vcmask 523264
    %58 = vst.msk [vmem:[#allocation2] sm:$0xff] %vm57, %v56
    %v59 = vld [vmem:[%s1] sm:$0xff]
    %61 = vrot.lane.b32.xlu0 %v59, 64
    %v62 = vpop.permute.xlu0 %61
    %vm64 = vcmask 1048064
    %65 = vst.msk [vmem:[#allocation2] sm:$0xff] %vm64, %v62
    %v66 = vld [vmem:[%s2] sm:$0xff]
    %v67 = vld [vmem:[%s2 + $0x8] sm:$0xff]
    %v68 = vld [vmem:[%s2 + $0x10] sm:$0xff]
    %69 = vst [vmem:[#allocation2 + $0x8] sm:$0xff] %v66
    %70 = vst [vmem:[#allocation2 + $0x10] sm:$0xff] %v67
    %71 = vst [vmem:[#allocation2 + $0x18] sm:$0xff] %v68
    %v72 = vld [vmem:[#allocation2] sm:$0xff]
    %v73 = vld [vmem:[#allocation2 + $0x8] sm:$0xff]
    %v74 = vld [vmem:[#allocation2 + $0x10] sm:$0xff]
    %v75 = vld [vmem:[#allocation2 + $0x18] sm:$0xff]
    %v76 = vld [vmem:[#allocation4] sm:$0xff]
    %v77 = vld [vmem:[#allocation4 + $0x8] sm:$0xff]
    %v78 = vld [vmem:[#allocation4 + $0x10] sm:$0xff]
    %v79 = vld [vmem:[#allocation4 + $0x18] sm:$0xff]
    %v80 = vld [vmem:[#allocation4 + $0x20] sm:$0xff]
    %v81 = vld [vmem:[#allocation4 + $0x28] sm:$0xff]
    %v82 = vld [vmem:[#allocation4 + $0x30] sm:$0xff]
    %v83 = vld [vmem:[#allocation4 + $0x38] sm:$0xff]
    %v84 = vld [vmem:[#allocation4 + $0x40] sm:$0xff]
    %v85 = vld [vmem:[#allocation4 + $0x48] sm:$0xff]
    %v86 = vld [vmem:[#allocation4 + $0x50] sm:$0xff]
    %v87 = vld [vmem:[#allocation4 + $0x58] sm:$0xff]
    %v88 = vld [vmem:[#allocation4 + $0x60] sm:$0xff]
    %v89 = vld [vmem:[#allocation4 + $0x68] sm:$0xff]
    %v90 = vld [vmem:[#allocation4 + $0x70] sm:$0xff]
    %v91 = vld [vmem:[#allocation4 + $0x78] sm:$0xff]
    %v92 = vld [vmem:[#allocation4 + $0x80] sm:$0xff]
    %v93 = vld [vmem:[#allocation4 + $0x88] sm:$0xff]
    %v94 = vld [vmem:[#allocation4 + $0x90] sm:$0xff]
    %v95 = vld [vmem:[#allocation4 + $0x98] sm:$0xff]
    %v96 = vld [vmem:[#allocation4 + $0xa0] sm:$0xff]
    %v97 = vld [vmem:[#allocation4 + $0xa8] sm:$0xff]
    %v98 = vld [vmem:[#allocation4 + $0xb0] sm:$0xff]
    %v99 = vld [vmem:[#allocation4 + $0xb8] sm:$0xff]
    %v100 = vld [vmem:[#allocation4 + $0xc0] sm:$0xff]
    %v101 = vld [vmem:[#allocation4 + $0xc8] sm:$0xff]
    %v102 = vld [vmem:[#allocation4 + $0xd0] sm:$0xff]
    %v103 = vld [vmem:[#allocation4 + $0xd8] sm:$0xff]
    %v104 = vld [vmem:[#allocation4 + $0xe0] sm:$0xff]
    %v105 = vld [vmem:[#allocation4 + $0xe8] sm:$0xff]
    %v106 = vld [vmem:[#allocation4 + $0xf0] sm:$0xff]
    %v107 = vld [vmem:[#allocation4 + $0xf8] sm:$0xff]
    %v108 = vld [vmem:[#allocation4 + $0x100] sm:$0xff]
    %v109 = vld [vmem:[#allocation4 + $0x108] sm:$0xff]
    %v110 = vld [vmem:[#allocation4 + $0x110] sm:$0xff]
    %v111 = vld [vmem:[#allocation4 + $0x118] sm:$0xff]
    %v112 = vld [vmem:[#allocation4 + $0x120] sm:$0xff]
    %v113 = vld [vmem:[#allocation4 + $0x128] sm:$0xff]
    %v114 = vld [vmem:[#allocation4 + $0x130] sm:$0xff]
    %v115 = vld [vmem:[#allocation4 + $0x138] sm:$0xff]
    %v116 = vld [vmem:[#allocation4 + $0x140] sm:$0xff]
    %v117 = vld [vmem:[#allocation4 + $0x148] sm:$0xff]
    %v118 = vld [vmem:[#allocation4 + $0x150] sm:$0xff]
    %v119 = vld [vmem:[#allocation4 + $0x158] sm:$0xff]
    %v120 = vld [vmem:[#allocation4 + $0x160] sm:$0xff]
    %v121 = vld [vmem:[#allocation4 + $0x168] sm:$0xff]
    %v122 = vld [vmem:[#allocation4 + $0x170] sm:$0xff]
    %v123 = vld [vmem:[#allocation4 + $0x178] sm:$0xff]
    %v124 = vld [vmem:[#allocation4 + $0x180] sm:$0xff]
    %v125 = vld [vmem:[#allocation4 + $0x188] sm:$0xff]
    %v126 = vld [vmem:[#allocation4 + $0x190] sm:$0xff]
    %v127 = vld [vmem:[#allocation4 + $0x198] sm:$0xff]
    %v128 = vld [vmem:[#allocation4 + $0x1a0] sm:$0xff]
    %v129 = vld [vmem:[#allocation4 + $0x1a8] sm:$0xff]
    %v130 = vld [vmem:[#allocation4 + $0x1b0] sm:$0xff]
    %v131 = vld [vmem:[#allocation4 + $0x1b8] sm:$0xff]
    %v132 = vld [vmem:[#allocation4 + $0x1c0] sm:$0xff]
    %v133 = vld [vmem:[#allocation4 + $0x1c8] sm:$0xff]
    %v134 = vld [vmem:[#allocation4 + $0x1d0] sm:$0xff]
    %v135 = vld [vmem:[#allocation4 + $0x1d8] sm:$0xff]
    %v136 = vld [vmem:[#allocation4 + $0x1e0] sm:$0xff]
    %v137 = vld [vmem:[#allocation4 + $0x1e8] sm:$0xff]
    %v138 = vld [vmem:[#allocation4 + $0x1f0] sm:$0xff]
    %v139 = vld [vmem:[#allocation4 + $0x1f8] sm:$0xff]
    %v140 = vld [vmem:[%s4] sm:$0x1]
    %v142 = vperm.slane %v140, 0
    %144 = vmatpush.msra.mxu0 %v91
    %145 = vmatpush.msra.mxu0 %v90
    %146 = vmatpush.msra.mxu0 %v89
    %147 = vmatpush.msra.mxu0 %v88
    %148 = vmatpush.msra.mxu0 %v87
    %149 = vmatpush.msra.mxu0 %v86
    %150 = vmatpush.msra.mxu0 %v85
    %151 = vmatpush.msra.mxu0 %v84
    %152 = vmatpush.msra.mxu0 %v83
    %153 = vmatpush.msra.mxu0 %v82
    %154 = vmatpush.msra.mxu0 %v81
    %155 = vmatpush.msra.mxu0 %v80
    %156 = vmatpush.msra.mxu0 %v79
    %157 = vmatpush.msra.mxu0 %v78
    %158 = vmatpush.msra.mxu0 %v77
    %159 = vmatpush.msra.mxu0 %v76
    %160 = vmatmul.f32.gmra.mxu0 %v72
    %v161 = vpop.f32.mrf.mxu0
    %v162 = vadd.f32 %v142, %v161
    %163 = vdwg.mxu0
    %164 = vmatpush.msra.mxu0 %v107
    %165 = vmatpush.msra.mxu0 %v106
    %166 = vmatpush.msra.mxu0 %v105
    %167 = vmatpush.msra.mxu0 %v104
    %168 = vmatpush.msra.mxu0 %v103
    %169 = vmatpush.msra.mxu0 %v102
    %170 = vmatpush.msra.mxu0 %v101
    %171 = vmatpush.msra.mxu0 %v100
    %172 = vmatpush.msra.mxu0 %v99
    %173 = vmatpush.msra.mxu0 %v98
    %174 = vmatpush.msra.mxu0 %v97
    %175 = vmatpush.msra.mxu0 %v96
    %176 = vmatpush.msra.mxu0 %v95
    %177 = vmatpush.msra.mxu0 %v94
    %178 = vmatpush.msra.mxu0 %v93
    %179 = vmatpush.msra.mxu0 %v92
    %180 = vmatmul.f32.gmra.mxu0 %v73
    %v181 = vpop.f32.mrf.mxu0
    %v182 = vadd.f32 %v162, %v181
    %183 = vdwg.mxu0
    %184 = vmatpush.msra.mxu0 %v123
    %185 = vmatpush.msra.mxu0 %v122
    %186 = vmatpush.msra.mxu0 %v121
    %187 = vmatpush.msra.mxu0 %v120
    %188 = vmatpush.msra.mxu0 %v119
    %189 = vmatpush.msra.mxu0 %v118
    %190 = vmatpush.msra.mxu0 %v117
    %191 = vmatpush.msra.mxu0 %v116
    %192 = vmatpush.msra.mxu0 %v115
    %193 = vmatpush.msra.mxu0 %v114
    %194 = vmatpush.msra.mxu0 %v113
    %195 = vmatpush.msra.mxu0 %v112
    %196 = vmatpush.msra.mxu0 %v111
    %197 = vmatpush.msra.mxu0 %v110
    %198 = vmatpush.msra.mxu0 %v109
    %199 = vmatpush.msra.mxu0 %v108
    %200 = vmatmul.f32.gmra.mxu0 %v74
    %v201 = vpop.f32.mrf.mxu0
    %v202 = vadd.f32 %v182, %v201
    %203 = vdwg.mxu0
    %204 = vmatpush.msra.mxu0 %v139
    %205 = vmatpush.msra.mxu0 %v138
    %206 = vmatpush.msra.mxu0 %v137
    %207 = vmatpush.msra.mxu0 %v136
    %208 = vmatpush.msra.mxu0 %v135
    %209 = vmatpush.msra.mxu0 %v134
    %210 = vmatpush.msra.mxu0 %v133
    %211 = vmatpush.msra.mxu0 %v132
    %212 = vmatpush.msra.mxu0 %v131
    %213 = vmatpush.msra.mxu0 %v130
    %214 = vmatpush.msra.mxu0 %v129
    %215 = vmatpush.msra.mxu0 %v128
    %216 = vmatpush.msra.mxu0 %v127
    %217 = vmatpush.msra.mxu0 %v126
    %218 = vmatpush.msra.mxu0 %v125
    %219 = vmatpush.msra.mxu0 %v124
    %220 = vmatmul.f32.gmra.mxu0 %v75
    %v221 = vpop.f32.mrf.mxu0
    %v222 = vadd.f32 %v202, %v221
    %223 = vdwg.mxu0
    %v224 = vmax.f32 %v222, 0.0
    %v225 = vld [vmem:[%s5] sm:$0xff]
    %v226 = vld [vmem:[%s5 + $0x8] sm:$0xff]
    %v227 = vld [vmem:[%s5 + $0x10] sm:$0xff]
    %v228 = vld [vmem:[%s5 + $0x18] sm:$0xff]
    %v229 = vld [vmem:[%s5 + $0x20] sm:$0xff]
    %v230 = vld [vmem:[%s5 + $0x28] sm:$0xff]
    %v231 = vld [vmem:[%s5 + $0x30] sm:$0xff]
    %v232 = vld [vmem:[%s5 + $0x38] sm:$0xff]
    %v233 = vld [vmem:[%s5 + $0x40] sm:$0xff]
    %v234 = vld [vmem:[%s5 + $0x48] sm:$0xff]
    %v235 = vld [vmem:[%s5 + $0x50] sm:$0xff]
    %v236 = vld [vmem:[%s5 + $0x58] sm:$0xff]
    %v237 = vld [vmem:[%s5 + $0x60] sm:$0xff]
    %v238 = vld [vmem:[%s5 + $0x68] sm:$0xff]
    %v239 = vld [vmem:[%s5 + $0x70] sm:$0xff]
    %v240 = vld [vmem:[%s5 + $0x78] sm:$0xff]
    %v241 = vld [vmem:[%s6] sm:$0x1]
    %v243 = vperm.slane %v241, 0
    %245 = vmatpush.msra.mxu0 %v240
    %246 = vmatpush.msra.mxu0 %v239
    %247 = vmatpush.msra.mxu0 %v238
    %248 = vmatpush.msra.mxu0 %v237
    %249 = vmatpush.msra.mxu0 %v236
    %250 = vmatpush.msra.mxu0 %v235
    %251 = vmatpush.msra.mxu0 %v234
    %252 = vmatpush.msra.mxu0 %v233
    %253 = vmatpush.msra.mxu0 %v232
    %254 = vmatpush.msra.mxu0 %v231
    %255 = vmatpush.msra.mxu0 %v230
    %256 = vmatpush.msra.mxu0 %v229
    %257 = vmatpush.msra.mxu0 %v228
    %258 = vmatpush.msra.mxu0 %v227
    %259 = vmatpush.msra.mxu0 %v226
    %260 = vmatpush.msra.mxu0 %v225
    %261 = vmatmul.f32.gmra.mxu0 %v224
    %v262 = vpop.f32.mrf.mxu0
    %v263 = vadd.f32 %v243, %v262
    %264 = vdwg.mxu0
    %v265 = vmax.f32 %v263, 0.0
    %v266 = vld [vmem:[%s7] sm:$0xff]
    %v267 = vld [vmem:[%s7 + $0x8] sm:$0xff]
    %v268 = vld [vmem:[%s7 + $0x10] sm:$0xff]
    %v269 = vld [vmem:[%s7 + $0x18] sm:$0xff]
    %v270 = vld [vmem:[%s7 + $0x20] sm:$0xff]
    %v271 = vld [vmem:[%s7 + $0x28] sm:$0xff]
    %v272 = vld [vmem:[%s7 + $0x30] sm:$0xff]
    %v273 = vld [vmem:[%s7 + $0x38] sm:$0xff]
    %v274 = vld [vmem:[%s8] sm:$0x1]
    %v276 = vperm.slane %v274, 0
    %v279 = vsel %vm57, %v265, 0
    %281 = vmatpush.msra.mxu0 0.0
    %282 = vmatpush.msra.mxu0 0.0
    %283 = vmatpush.msra.mxu0 0.0
    %284 = vmatpush.msra.mxu0 0.0
    %285 = vmatpush.msra.mxu0 0.0
    %286 = vmatpush.msra.mxu0 0.0
    %287 = vmatpush.msra.mxu0 0.0
    %288 = vmatpush.msra.mxu0 0.0
    %289 = vmatpush.msra.mxu0 %v273
    %290 = vmatpush.msra.mxu0 %v272
    %291 = vmatpush.msra.mxu0 %v271
    %292 = vmatpush.msra.mxu0 %v270
    %293 = vmatpush.msra.mxu0 %v269
    %294 = vmatpush.msra.mxu0 %v268
    %295 = vmatpush.msra.mxu0 %v267
    %296 = vmatpush.msra.mxu0 %v266
    %297 = vmatmul.f32.gmra.mxu0 %v279
    %v298 = vpop.f32.mrf.mxu0
    %v299 = vadd.f32 %v276, %v298
    %300 = vdwg.mxu0
    %v301 = vmax.f32 %v299, 0.0
    %v302 = vld [vmem:[%s9] sm:$0x1]
    %v304 = vperm.slane %v302, 0
    %v306 = vmul.f32 %v301, %v304
    %vm307 = vcmask 261120
    %v308 = vsel %vm307, %v306, 0.0
    %309 = vadd.xlane.f32.xlu0 %v308
    %v310 = vpop.xlane.xlu0 %309
    %v311 = vld [vmem:[#allocation3] sm:$0x1]
    %v313 = vperm.slane %v311, 0
    %v315 = vadd.f32 %v310, %v313
    %v316 = vsub.f32 0.0, %v315
    %v317 = vmul.f32 %v316, 1.442695
    %v318 = vpow.pop %v317
    %v319 = vadd.f32 %v318, 1.0
    %v320 = vrcp.pop %v319
    %v321 = vmul.f32 %v319, %v320
    %v322 = vsub.f32 1.0, %v321
    %v323 = vmul.f32 %v320, %v322
    %v324 = vadd.f32 %v320, %v323
    %vm325 = vweird.f32 %v319
    %vm326 = vweird.f32 %v320
    %vm327 = vmor %vm325, %vm326
    %v328 = vsel %vm327, %v320, %v324
    %v329 = vand.u32 2147483647, %v319
    %vm330 = vcmp.eq.f32.partialorder %v329, 8.507059e+37
    %v331 = vand.u32 %v319, 2147483648
    %v332 = vor.u32 1.1754944e-38, %v331
    %v333 = vsel %vm330, %v332, %v328
    %v334 = vmul.f32 1.0, %v333
    %vm335 = vcmask 7168
    %336 = vst.msk [vmem:[%s11] sm:$0xff] %vm335, %v334
    // Predicated region
    $region50: #{tpu_custom_call.1} parent=1 // pred_check
      _
    $region51: #{tpu_custom_call.1} parent=1 // pred_check_branch
      %338 = sbr.rel (0) target = $region53
    $region52: #{tpu_custom_call.1} parent=1 // pred_region
      _
    $region53: #{tpu_custom_call.1} parent=1 // pred_fallthru
      _
    // Predicated region
    $region54: #{tpu_custom_call.1} parent=1 // pred_check
      _
    $region55: #{tpu_custom_call.1} parent=1 // pred_check_branch
      %340 = sbr.rel (0) target = $region57
    $region56: #{tpu_custom_call.1} parent=1 // pred_region
      _
    $region57: #{tpu_custom_call.1} parent=1 // pred_fallthru
      _
    %341 = vsyncpa [#allocation5], 1

</llo_original>
